<compile_context>
chip_gen: v6e
topology: v6e:2x2x1
jax: 0.10.0
libtpu: 0.0.40
codegen_flags: <defaults>
</compile_context>

<pallas_src>
import jax
import jax.numpy as jnp
import numpy as np
from jax.experimental import pallas as pl
from jax.experimental.pallas import tpu as pltpu

NUM_BINS = 21            # input length
NUM_CH = 24              # input channels
C1, C2 = 8, 4            # conv1 / conv2 output channels
K = 5                    # conv kernel size
L1 = 21                  # conv1 output length ('same')
L2 = 22                  # pool1 output length (k=2, s=1, p=1)
L3 = 23                  # pool2 output length
P = 32                   # per-channel padded length inside the kernel
IN_FLAT = NUM_CH * NUM_BINS   # 504  (channel-major flat input)
F1 = C1 * P                   # 256  conv1 activation slab width
F2 = C2 * P                   # 128  conv2 activation slab width
FEAT = C2 * L3                # 92   true flattened feature count
HID = 64
OUT = 2
OUT_PAD = 128                 # lane-dense padded output width


def _gps_kernel(x_ref, w1_ref, b1_ref, s1_ref, w2_ref, b2_ref, s2_ref,
                fw1_ref, fb1_ref, fw2_ref, fb2_ref, out_ref):
    """Entire forward pass for one batch tile; everything stays on-chip."""
    x = x_ref[...]                                               # (bt, 504)

    # conv1 as one im2col dense matmul + bias + ReLU           -> (bt, 256)
    y1 = jnp.dot(x, w1_ref[...], preferred_element_type=jnp.float32) + b1_ref[...]
    y1 = jnp.maximum(y1, 0.0)
    # maxpool(2,1,1): max(y, y shifted right by one position). Shift done via a
    # constant shift matrix (channel-boundary columns are zero = pool padding).
    p1 = jnp.maximum(y1, jnp.dot(y1, s1_ref[...],
                                 preferred_element_type=jnp.float32))

    # conv2 dense matmul + bias + ReLU                         -> (bt, 128)
    y2 = jnp.dot(p1, w2_ref[...], preferred_element_type=jnp.float32) + b2_ref[...]
    y2 = jnp.maximum(y2, 0.0)
    p2 = jnp.maximum(y2, jnp.dot(y2, s2_ref[...],
                                 preferred_element_type=jnp.float32))

    # fc1 + ReLU (flatten order absorbed in fw1's row layout)  -> (bt, 64)
    h = jnp.dot(p2, fw1_ref[...], preferred_element_type=jnp.float32) + fb1_ref[...]
    h = jnp.maximum(h, 0.0)

    # fc2, padded to 128 output lanes (cols >= 2 are zero)     -> (bt, 128)
    out_ref[...] = (jnp.dot(h, fw2_ref[...], preferred_element_type=jnp.float32)
                    + fb2_ref[...])


# ----------------------------------------------------------------------------
# Wrapper-side (tiny, one-time) weight re-packing.
# ----------------------------------------------------------------------------
def _dense_conv_weight(w, lin, lout, pin, pout):
    """(Cout, Cin, K) conv weight -> (Cin*pin, Cout*pout) dense matrix.

    dense[ci*pin + lp, co*pout + l] = w[co, ci, lp - l + K//2] when that tap
    exists, else 0.  Rows lp >= lin and columns l >= lout are zero, so the
    padded tail positions of every activation slab stay exactly zero.
    """
    cout, cin, k = w.shape
    lp = jnp.arange(lin)
    l = jnp.arange(lout)
    taps = lp[None, :] - l[:, None] + k // 2                     # (lout, lin)
    valid = (taps >= 0) & (taps < k)
    wk = jnp.where(valid[None, None], w[:, :, jnp.clip(taps, 0, k - 1)], 0.0)
    dense = jnp.zeros((cin, pin, cout, pout), w.dtype)
    dense = dense.at[:, :lin, :, :lout].set(jnp.transpose(wk, (1, 3, 0, 2)))
    return dense.reshape(cin * pin, cout * pout)


def _bias_row(b, lvalid, pout):
    cout = b.shape[0]
    row = jnp.zeros((cout, pout), b.dtype).at[:, :lvalid].set(b[:, None])
    return row.reshape(1, cout * pout)


def _shift_matrix(n, period):
    """prev = y @ S gives prev[:, j] = y[:, j-1]; zero at each channel start."""
    m = np.zeros((n, n), np.float32)
    for j in range(1, n):
        if j % period != 0:
            m[j - 1, j] = 1.0
    return jnp.asarray(m)


def gps_cnn_forward(x_ncl, params, *, btile=512):
    """x_ncl: (B, 24, 21) float32 (PyTorch NCL layout). Returns (B, 2)."""
    B = x_ncl.shape[0]
    bt = int(min(btile, B))
    n_tiles = pl.cdiv(B, bt)
    Bp = n_tiles * bt

    # (B, 24, 21) -> (B, 504): contiguous channel-major flatten (free reshape).
    xf = x_ncl.reshape(B, IN_FLAT).astype(jnp.float32)
    if Bp != B:
        xf = jnp.pad(xf, ((0, Bp - B), (0, 0)))

    f32 = jnp.float32
    w1d = _dense_conv_weight(params["conv1_w"].astype(f32),
                             NUM_BINS, L1, NUM_BINS, P)          # (504, 256)
    b1r = _bias_row(params["conv1_b"].astype(f32), L1, P)        # (1, 256)
    w2d = _dense_conv_weight(params["conv2_w"].astype(f32),
                             L2, L2, P, P)                       # (256, 128)
    b2r = _bias_row(params["conv2_b"].astype(f32), L2, P)        # (1, 128)
    s1 = _shift_matrix(F1, P)                                    # (256, 256)
    s2 = _shift_matrix(F2, P)                                    # (128, 128)

    # fc1: map PyTorch flatten order (co*23 + l) onto slab rows (co*32 + l).
    fw1 = params["fc1_w"].astype(f32).reshape(HID, C2, L3)       # (64, 4, 23)
    fw1p = jnp.zeros((C2, P, HID), f32).at[:, :L3, :].set(
        jnp.transpose(fw1, (1, 2, 0))).reshape(F2, HID)          # (128, 64)
    fb1r = params["fc1_b"].astype(f32).reshape(1, HID)           # (1, 64)
    # fc2 padded to 128 output lanes.
    fw2p = jnp.zeros((HID, OUT_PAD), f32).at[:, :OUT].set(
        params["fc2_w"].astype(f32).T)                           # (64, 128)
    fb2r = jnp.zeros((1, OUT_PAD), f32).at[:, :OUT].set(
        params["fc2_b"].astype(f32))                             # (1, 128)

    const = lambda i: (0, 0)
    out_padded = pl.pallas_call(
        _gps_kernel,
        out_shape=jax.ShapeDtypeStruct((Bp, OUT_PAD), jnp.float32),
        grid=(n_tiles,),
        in_specs=[
            pl.BlockSpec((bt, IN_FLAT), lambda i: (i, 0)),   # x tile
            pl.BlockSpec((IN_FLAT, F1), const),              # conv1 dense
            pl.BlockSpec((1, F1), const),                    # conv1 bias row
            pl.BlockSpec((F1, F1), const),                   # pool1 shift
            pl.BlockSpec((F1, F2), const),                   # conv2 dense
            pl.BlockSpec((1, F2), const),                    # conv2 bias row
            pl.BlockSpec((F2, F2), const),                   # pool2 shift
            pl.BlockSpec((F2, HID), const),                  # fc1 (padded rows)
            pl.BlockSpec((1, HID), const),                   # fc1 bias
            pl.BlockSpec((HID, OUT_PAD), const),             # fc2 (padded cols)
            pl.BlockSpec((1, OUT_PAD), const),               # fc2 bias (padded)
        ],
        out_specs=pl.BlockSpec((bt, OUT_PAD), lambda i: (i, 0)),
        compiler_params=pltpu.CompilerParams(
            dimension_semantics=("parallel",)),
    )(xf, w1d, b1r, s1, w2d, b2r, s2, fw1p, fb1r, fw2p, fb2r)

    return out_padded[:B, :OUT]


def reference_forward(x, params):
    """Pure-JAX emulation of the PyTorch forward (NCL layout), for checking."""
    def conv1d_same(h, w, b):
        out = jax.lax.conv_general_dilated(
            h, w, window_strides=(1,), padding="SAME",
            dimension_numbers=("NCH", "OIH", "NCH"))
        return out + b[None, :, None]

    def maxpool_2_1_1(h):
        hp = jnp.pad(h, ((0, 0), (0, 0), (1, 1)), constant_values=-jnp.inf)
        return jnp.maximum(hp[:, :, :-1], hp[:, :, 1:])

    h = maxpool_2_1_1(jax.nn.relu(conv1d_same(x, params["conv1_w"], params["conv1_b"])))
    h = maxpool_2_1_1(jax.nn.relu(conv1d_same(h, params["conv2_w"], params["conv2_b"])))
    h = h.reshape(h.shape[0], -1)                                # (B, 92)
    h = jax.nn.relu(h @ params["fc1_w"].T + params["fc1_b"])
    return h @ params["fc2_w"].T + params["fc2_b"]


if __name__ == "__main__":
    key = jax.random.PRNGKey(0)
    ks = jax.random.split(key, 10)
    params = {
        "conv1_w": 0.1 * jax.random.normal(ks[0], (C1, NUM_CH, K), jnp.float32),
        "conv1_b": 0.1 * jax.random.normal(ks[1], (C1,), jnp.float32),
        "conv2_w": 0.1 * jax.random.normal(ks[2], (C2, C1, K), jnp.float32),
        "conv2_b": 0.1 * jax.random.normal(ks[3], (C2,), jnp.float32),
        "fc1_w": 0.1 * jax.random.normal(ks[4], (HID, FEAT), jnp.float32),
        "fc1_b": 0.1 * jax.random.normal(ks[5], (HID,), jnp.float32),
        "fc2_w": 0.1 * jax.random.normal(ks[6], (OUT, HID), jnp.float32),
        "fc2_b": 0.1 * jax.random.normal(ks[7], (OUT,), jnp.float32),
    }

    # Small shape consistent with the module: batch=2, 24 channels, 21 bins.
    x_small = jax.random.normal(ks[8], (2, NUM_CH, NUM_BINS), jnp.float32)
    out_small = jax.block_until_ready(gps_cnn_forward(x_small, params))
    ref_small = jax.block_until_ready(reference_forward(x_small, params))
    assert out_small.shape == (2, OUT)
    np.testing.assert_allclose(np.asarray(out_small), np.asarray(ref_small),
                               rtol=1e-2, atol=1e-2)

    # Also exercise the batch-tiled / padded multi-step grid path.
    x_big = jax.random.normal(ks[9], (200, NUM_CH, NUM_BINS), jnp.float32)
    out_big = jax.block_until_ready(gps_cnn_forward(x_big, params, btile=128))
    ref_big = jax.block_until_ready(reference_forward(x_big, params))
    assert out_big.shape == (200, OUT)
    np.testing.assert_allclose(np.asarray(out_big), np.asarray(ref_big),
                               rtol=1e-2, atol=1e-2)

    print("KERNEL_OK")
</pallas_src>

<mosaic_0001>
module attributes {stable_mosaic.version = 11 : i64} {
  func.func @_gps_kernel(%arg0: i32, %arg1: memref<2x504xf32, #tpu.memory_space<vmem>>, %arg2: memref<504x256xf32, #tpu.memory_space<vmem>>, %arg3: memref<1x256xf32, #tpu.memory_space<vmem>>, %arg4: memref<256x256xf32, #tpu.memory_space<vmem>>, %arg5: memref<256x128xf32, #tpu.memory_space<vmem>>, %arg6: memref<1x128xf32, #tpu.memory_space<vmem>>, %arg7: memref<128x128xf32, #tpu.memory_space<vmem>>, %arg8: memref<128x64xf32, #tpu.memory_space<vmem>>, %arg9: memref<1x64xf32, #tpu.memory_space<vmem>>, %arg10: memref<64x128xf32, #tpu.memory_space<vmem>>, %arg11: memref<1x128xf32, #tpu.memory_space<vmem>>, %arg12: memref<2x128xf32, #tpu.memory_space<vmem>>) attributes {dimension_semantics = [#tpu.dimension_semantics<parallel>], iteration_bounds = array<i64: 1>, scalar_prefetch = 0 : i64, scratch_operands = 0 : i64, tpu.core_type = #tpu.core_type<tc>, window_params = [{transform_indices = @transform_0, window_bounds = array<i64: 2, 504>}, {pipeline_mode = #tpu.pipeline_mode<synchronous>, transform_indices = @transform_1, window_bounds = array<i64: 504, 256>}, {pipeline_mode = #tpu.pipeline_mode<synchronous>, transform_indices = @transform_2, window_bounds = array<i64: 1, 256>}, {pipeline_mode = #tpu.pipeline_mode<synchronous>, transform_indices = @transform_3, window_bounds = array<i64: 256, 256>}, {pipeline_mode = #tpu.pipeline_mode<synchronous>, transform_indices = @transform_4, window_bounds = array<i64: 256, 128>}, {pipeline_mode = #tpu.pipeline_mode<synchronous>, transform_indices = @transform_5, window_bounds = array<i64: 1, 128>}, {pipeline_mode = #tpu.pipeline_mode<synchronous>, transform_indices = @transform_6, window_bounds = array<i64: 128, 128>}, {pipeline_mode = #tpu.pipeline_mode<synchronous>, transform_indices = @transform_7, window_bounds = array<i64: 128, 64>}, {pipeline_mode = #tpu.pipeline_mode<synchronous>, transform_indices = @transform_8, window_bounds = array<i64: 1, 64>}, {pipeline_mode = #tpu.pipeline_mode<synchronous>, transform_indices = @transform_9, window_bounds = array<i64: 64, 128>}, {pipeline_mode = #tpu.pipeline_mode<synchronous>, transform_indices = @transform_10, window_bounds = array<i64: 1, 128>}, {transform_indices = @transform_11, window_bounds = array<i64: 2, 128>}]} {
    %c0 = arith.constant 0 : index
    %c0_0 = arith.constant 0 : index
    %0 = vector.load %arg1[%c0, %c0_0] : memref<2x504xf32, #tpu.memory_space<vmem>>, vector<2x504xf32>
    %c0_1 = arith.constant 0 : index
    %c0_2 = arith.constant 0 : index
    %1 = vector.load %arg2[%c0_1, %c0_2] : memref<504x256xf32, #tpu.memory_space<vmem>>, vector<504x256xf32>
    %cst = arith.constant dense<0.000000e+00> : vector<2x256xf32>
    %2 = tpu.matmul %0, %1, %cst {dimension_numbers = #tpu.dot_dimension_numbers<[1], [0], [0], [1], [0, 0, 1, 1], [], []>} : vector<2x504xf32>, vector<504x256xf32>, vector<2x256xf32> -> vector<2x256xf32>
    %c0_3 = arith.constant 0 : index
    %c0_4 = arith.constant 0 : index
    %3 = vector.load %arg3[%c0_3, %c0_4] : memref<1x256xf32, #tpu.memory_space<vmem>>, vector<1x256xf32>
    %4 = vector.broadcast %3 : vector<1x256xf32> to vector<2x256xf32>
    %5 = arith.addf %2, %4 : vector<2x256xf32>
    %cst_5 = arith.constant 0.000000e+00 : f32
    %6 = vector.broadcast %cst_5 : f32 to vector<2x256xf32>
    %7 = arith.maximumf %5, %6 : vector<2x256xf32>
    %c0_6 = arith.constant 0 : index
    %c0_7 = arith.constant 0 : index
    %8 = vector.load %arg4[%c0_6, %c0_7] : memref<256x256xf32, #tpu.memory_space<vmem>>, vector<256x256xf32>
    %cst_8 = arith.constant dense<0.000000e+00> : vector<2x256xf32>
    %9 = tpu.matmul %7, %8, %cst_8 {dimension_numbers = #tpu.dot_dimension_numbers<[1], [0], [0], [1], [0, 0, 1, 1], [], []>} : vector<2x256xf32>, vector<256x256xf32>, vector<2x256xf32> -> vector<2x256xf32>
    %10 = arith.maximumf %7, %9 : vector<2x256xf32>
    %c0_9 = arith.constant 0 : index
    %c0_10 = arith.constant 0 : index
    %11 = vector.load %arg5[%c0_9, %c0_10] : memref<256x128xf32, #tpu.memory_space<vmem>>, vector<256x128xf32>
    %cst_11 = arith.constant dense<0.000000e+00> : vector<2x128xf32>
    %12 = tpu.matmul %10, %11, %cst_11 {dimension_numbers = #tpu.dot_dimension_numbers<[1], [0], [0], [1], [0, 0, 1, 1], [], []>} : vector<2x256xf32>, vector<256x128xf32>, vector<2x128xf32> -> vector<2x128xf32>
    %c0_12 = arith.constant 0 : index
    %c0_13 = arith.constant 0 : index
    %13 = vector.load %arg6[%c0_12, %c0_13] : memref<1x128xf32, #tpu.memory_space<vmem>>, vector<1x128xf32>
    %14 = vector.broadcast %13 : vector<1x128xf32> to vector<2x128xf32>
    %15 = arith.addf %12, %14 : vector<2x128xf32>
    %cst_14 = arith.constant 0.000000e+00 : f32
    %16 = vector.broadcast %cst_14 : f32 to vector<2x128xf32>
    %17 = arith.maximumf %15, %16 : vector<2x128xf32>
    %c0_15 = arith.constant 0 : index
    %c0_16 = arith.constant 0 : index
    %18 = vector.load %arg7[%c0_15, %c0_16] : memref<128x128xf32, #tpu.memory_space<vmem>>, vector<128x128xf32>
    %cst_17 = arith.constant dense<0.000000e+00> : vector<2x128xf32>
    %19 = tpu.matmul %17, %18, %cst_17 {dimension_numbers = #tpu.dot_dimension_numbers<[1], [0], [0], [1], [0, 0, 1, 1], [], []>} : vector<2x128xf32>, vector<128x128xf32>, vector<2x128xf32> -> vector<2x128xf32>
    %20 = arith.maximumf %17, %19 : vector<2x128xf32>
    %c0_18 = arith.constant 0 : index
    %c0_19 = arith.constant 0 : index
    %21 = vector.load %arg8[%c0_18, %c0_19] : memref<128x64xf32, #tpu.memory_space<vmem>>, vector<128x64xf32>
    %cst_20 = arith.constant dense<0.000000e+00> : vector<2x64xf32>
    %22 = tpu.matmul %20, %21, %cst_20 {dimension_numbers = #tpu.dot_dimension_numbers<[1], [0], [0], [1], [0, 0, 1, 1], [], []>} : vector<2x128xf32>, vector<128x64xf32>, vector<2x64xf32> -> vector<2x64xf32>
    %c0_21 = arith.constant 0 : index
    %c0_22 = arith.constant 0 : index
    %23 = vector.load %arg9[%c0_21, %c0_22] : memref<1x64xf32, #tpu.memory_space<vmem>>, vector<1x64xf32>
    %24 = vector.broadcast %23 : vector<1x64xf32> to vector<2x64xf32>
    %25 = arith.addf %22, %24 : vector<2x64xf32>
    %cst_23 = arith.constant 0.000000e+00 : f32
    %26 = vector.broadcast %cst_23 : f32 to vector<2x64xf32>
    %27 = arith.maximumf %25, %26 : vector<2x64xf32>
    %c0_24 = arith.constant 0 : index
    %c0_25 = arith.constant 0 : index
    %28 = vector.load %arg10[%c0_24, %c0_25] : memref<64x128xf32, #tpu.memory_space<vmem>>, vector<64x128xf32>
    %cst_26 = arith.constant dense<0.000000e+00> : vector<2x128xf32>
    %29 = tpu.matmul %27, %28, %cst_26 {dimension_numbers = #tpu.dot_dimension_numbers<[1], [0], [0], [1], [0, 0, 1, 1], [], []>} : vector<2x64xf32>, vector<64x128xf32>, vector<2x128xf32> -> vector<2x128xf32>
    %c0_27 = arith.constant 0 : index
    %c0_28 = arith.constant 0 : index
    %30 = vector.load %arg11[%c0_27, %c0_28] : memref<1x128xf32, #tpu.memory_space<vmem>>, vector<1x128xf32>
    %31 = vector.broadcast %30 : vector<1x128xf32> to vector<2x128xf32>
    %32 = arith.addf %29, %31 : vector<2x128xf32>
    %c0_29 = arith.constant 0 : index
    %c0_30 = arith.constant 0 : index
    %33 = vector.load %arg12[%c0_29, %c0_30] : memref<2x128xf32, #tpu.memory_space<vmem>>, vector<2x128xf32>
    tpu.vector_store %arg12[%c0_29, %c0_30], %32 {strides = array<i32>} : memref<2x128xf32, #tpu.memory_space<vmem>>, vector<2x128xf32>,
    return
  }
  func.func @transform_0(%arg0: i32) -> (i32, i32) {
    %c0_i32 = arith.constant 0 : i32
    %c0_i32_0 = arith.constant 0 : i32
    return %arg0, %c0_i32 : i32, i32
  }
  func.func @transform_1(%arg0: i32) -> (i32, i32) {
    %c0_i32 = arith.constant 0 : i32
    %c0_i32_0 = arith.constant 0 : i32
    %c0_i32_1 = arith.constant 0 : i32
    return %c0_i32, %c0_i32_0 : i32, i32
  }
  func.func @transform_2(%arg0: i32) -> (i32, i32) {
    %c0_i32 = arith.constant 0 : i32
    %c0_i32_0 = arith.constant 0 : i32
    %c0_i32_1 = arith.constant 0 : i32
    return %c0_i32, %c0_i32_0 : i32, i32
  }
  func.func @transform_3(%arg0: i32) -> (i32, i32) {
    %c0_i32 = arith.constant 0 : i32
    %c0_i32_0 = arith.constant 0 : i32
    %c0_i32_1 = arith.constant 0 : i32
    return %c0_i32, %c0_i32_0 : i32, i32
  }
  func.func @transform_4(%arg0: i32) -> (i32, i32) {
    %c0_i32 = arith.constant 0 : i32
    %c0_i32_0 = arith.constant 0 : i32
    %c0_i32_1 = arith.constant 0 : i32
    return %c0_i32, %c0_i32_0 : i32, i32
  }
  func.func @transform_5(%arg0: i32) -> (i32, i32) {
    %c0_i32 = arith.constant 0 : i32
    %c0_i32_0 = arith.constant 0 : i32
    %c0_i32_1 = arith.constant 0 : i32
    return %c0_i32, %c0_i32_0 : i32, i32
  }
  func.func @transform_6(%arg0: i32) -> (i32, i32) {
    %c0_i32 = arith.constant 0 : i32
    %c0_i32_0 = arith.constant 0 : i32
    %c0_i32_1 = arith.constant 0 : i32
    return %c0_i32, %c0_i32_0 : i32, i32
  }
  func.func @transform_7(%arg0: i32) -> (i32, i32) {
    %c0_i32 = arith.constant 0 : i32
    %c0_i32_0 = arith.constant 0 : i32
    %c0_i32_1 = arith.constant 0 : i32
    return %c0_i32, %c0_i32_0 : i32, i32
  }
  func.func @transform_8(%arg0: i32) -> (i32, i32) {
    %c0_i32 = arith.constant 0 : i32
    %c0_i32_0 = arith.constant 0 : i32
    %c0_i32_1 = arith.constant 0 : i32
    return %c0_i32, %c0_i32_0 : i32, i32
  }
  func.func @transform_9(%arg0: i32) -> (i32, i32) {
    %c0_i32 = arith.constant 0 : i32
    %c0_i32_0 = arith.constant 0 : i32
    %c0_i32_1 = arith.constant 0 : i32
    return %c0_i32, %c0_i32_0 : i32, i32
  }
  func.func @transform_10(%arg0: i32) -> (i32, i32) {
    %c0_i32 = arith.constant 0 : i32
    %c0_i32_0 = arith.constant 0 : i32
    %c0_i32_1 = arith.constant 0 : i32
    return %c0_i32, %c0_i32_0 : i32, i32
  }
  func.func @transform_11(%arg0: i32) -> (i32, i32) {
    %c0_i32 = arith.constant 0 : i32
    %c0_i32_0 = arith.constant 0 : i32
    return %arg0, %c0_i32 : i32, i32
  }
}

</mosaic_0001>

<llo_original>
// kernel: tpu_custom_call.1
$region0: #{tpu_custom_call.1}
  #allocation0 [shape = 'u32[]', space=smem, size = 0x4, offset = 0x4, fixed_abs, tag = 'smem constant byte address 0x4 - core index']
  #allocation1 [shape = 'u32[144,128]{1,0:T(1,128)}', space=vmem, size = 0x12000, scoped, tag = 'internal scratch']
  %s0 = inlined_call_operand.vmem [shape: f32[2,504], index: 0, kind: input, shape index: {}]
  %s1 = inlined_call_operand.hbm [shape: f32[504,256], index: 1, kind: input, shape index: {}]
  %s2 = inlined_call_operand.vmem [shape: f32[1,256], index: 2, kind: input, shape index: {}]
  %s3 = inlined_call_operand.hbm [shape: f32[256,256], index: 3, kind: input, shape index: {}]
  %s4 = inlined_call_operand.hbm [shape: f32[256,128], index: 4, kind: input, shape index: {}]
  %s5 = inlined_call_operand.hbm [shape: f32[1,128], index: 5, kind: input, shape index: {}]
  %s6 = inlined_call_operand.vmem [shape: f32[128,128], index: 6, kind: input, shape index: {}]
  %s7 = inlined_call_operand.vmem [shape: f32[128,64], index: 7, kind: input, shape index: {}]
  %s8 = inlined_call_operand.vmem [shape: f32[1,64], index: 8, kind: input, shape index: {}]
  %s9 = inlined_call_operand.vmem [shape: f32[64,128], index: 9, kind: input, shape index: {}]
  %s10 = inlined_call_operand.vmem [shape: f32[1,128], index: 10, kind: input, shape index: {}]
  %s11 = inlined_call_operand.hbm [shape: f32[2,128], index: 11, kind: output, shape index: {}]
  %s12 = sld [smem:[#allocation0]]
  $region70: #{tpu_custom_call.1} parent=0
    _
  %s14 = ssub.s32 1, %s12
  %s15 = scalar_select 0, %s14, %s12
  $region1: #{tpu_custom_call.1} parent=0
    #allocation2 [shape = 'u8[516096]{0}', space=vmem, size = 0x7e000, scoped, tag = 'input window, operand 1, single buffered']
    #allocation3 [shape = 's32[1]{0}', space=sflag, size = 0x4, scoped, tag = 'scoped memory for tpu_custom_call.1']
    #allocation4 [shape = 's32[1]{0}', space=sflag, size = 0x4, scoped, tag = 'scoped memory for tpu_custom_call.1']
    #allocation5 [shape = 'u8[262144]{0}', space=vmem, size = 0x40000, scoped, tag = 'input window, operand 3, single buffered']
    #allocation6 [shape = 's32[1]{0}', space=sflag, size = 0x4, scoped, tag = 'scoped memory for tpu_custom_call.1']
    #allocation7 [shape = 'u8[131072]{0}', space=vmem, size = 0x20000, scoped, tag = 'input window, operand 4, single buffered']
    #allocation8 [shape = 'u8[512]{0}', space=vmem, size = 0x400, scoped, tag = 'input window, operand 5, single buffered']
    #allocation9 [shape = 's32[1]{0}', space=sflag, size = 0x4, scoped, tag = 'scoped memory for tpu_custom_call.1']
    #allocation10 [shape = 'u8[1024]{0}', space=vmem, size = 0x400, scoped, tag = 'output window, operand 0, single buffered']
    %16 = vsyncpa [#allocation3], 0
    %17 = vsyncpa [#allocation6], 0
    %18 = vsyncpa [#allocation9], 0
    %19 = vsyncpa [#allocation4], 0
    // Predicated region
    $region2: #{tpu_custom_call.1} parent=1 // pred_check
      _
    $region3: #{tpu_custom_call.1} parent=1 // pred_check_branch
      %21 = sbr.rel (0) target = $region5
    $region4: #{tpu_custom_call.1} parent=1 // pred_region
      _
    $region5: #{tpu_custom_call.1} parent=1 // pred_fallthru
      _
    // Predicated region
    $region6: #{tpu_custom_call.1} parent=1 // pred_check
      _
    $region7: #{tpu_custom_call.1} parent=1 // pred_check_branch
      %23 = sbr.rel (0) target = $region9
    $region8: #{tpu_custom_call.1} parent=1 // pred_region
      %s25 = ssub.s32 16128, 16128
      %26 = vsyncadd [#allocation3], %s25
      %s27 = sshll.u32 [#allocation2], 4
      %s28 = int_to_ptr.vmem [resolvable:$true] %s27
      %33 = dma.hbm_to_vmem [thread:$0]  %s1, 16128, %s28, [#allocation3], 256, 256, 16
    $region9: #{tpu_custom_call.1} parent=1 // pred_fallthru
      _
    // Predicated region
    $region10: #{tpu_custom_call.1} parent=1 // pred_check
      _
    $region11: #{tpu_custom_call.1} parent=1 // pred_check_branch
      %35 = sbr.rel (0) target = $region13
    $region12: #{tpu_custom_call.1} parent=1 // pred_region
      _
    $region13: #{tpu_custom_call.1} parent=1 // pred_fallthru
      _
    // Predicated region
    $region14: #{tpu_custom_call.1} parent=1 // pred_check
      _
    $region15: #{tpu_custom_call.1} parent=1 // pred_check_branch
      %37 = sbr.rel (0) target = $region17
    $region16: #{tpu_custom_call.1} parent=1 // pred_region
      %s39 = ssub.s32 8192, 8192
      %40 = vsyncadd [#allocation6], %s39
      %s41 = sshll.u32 [#allocation5], 4
      %s42 = int_to_ptr.vmem [resolvable:$true] %s41
      %47 = dma.hbm_to_vmem [thread:$0]  %s3, 8192, %s42, [#allocation6], 256, 256, 16
    $region17: #{tpu_custom_call.1} parent=1 // pred_fallthru
      _
    // Predicated region
    $region18: #{tpu_custom_call.1} parent=1 // pred_check
      _
    $region19: #{tpu_custom_call.1} parent=1 // pred_check_branch
      %49 = sbr.rel (0) target = $region21
    $region20: #{tpu_custom_call.1} parent=1 // pred_region
      %s51 = ssub.s32 4096, 4096
      %52 = vsyncadd [#allocation6], %s51
      %s53 = sshll.u32 [#allocation7], 4
      %s54 = int_to_ptr.vmem [resolvable:$true] %s53
      %59 = dma.hbm_to_vmem [thread:$0]  %s4, 4096, %s54, [#allocation6], 128, 128, 8
    $region21: #{tpu_custom_call.1} parent=1 // pred_fallthru
      _
    // Predicated region
    $region22: #{tpu_custom_call.1} parent=1 // pred_check
      _
    $region23: #{tpu_custom_call.1} parent=1 // pred_check_branch
      %61 = sbr.rel (0) target = $region25
    $region24: #{tpu_custom_call.1} parent=1 // pred_region
      %s63 = ssub.s32 16, 16
      %64 = vsyncadd [#allocation9], %s63
      %s66 = sshll.u32 [#allocation8], 4
      %s67 = int_to_ptr.vmem [resolvable:$true] %s66
      %69 = dma.hbm_to_vmem [thread:$0]  %s5, 16, %s67, [#allocation9]
    $region25: #{tpu_custom_call.1} parent=1 // pred_fallthru
      _
    // Predicated region
    $region26: #{tpu_custom_call.1} parent=1 // pred_check
      _
    $region27: #{tpu_custom_call.1} parent=1 // pred_check_branch
      %71 = sbr.rel (0) target = $region29
    $region28: #{tpu_custom_call.1} parent=1 // pred_region
      _
    $region29: #{tpu_custom_call.1} parent=1 // pred_fallthru
      _
    // Predicated region
    $region30: #{tpu_custom_call.1} parent=1 // pred_check
      _
    $region31: #{tpu_custom_call.1} parent=1 // pred_check_branch
      %73 = sbr.rel (0) target = $region33
    $region32: #{tpu_custom_call.1} parent=1 // pred_region
      _
    $region33: #{tpu_custom_call.1} parent=1 // pred_fallthru
      _
    // Predicated region
    $region34: #{tpu_custom_call.1} parent=1 // pred_check
      _
    $region35: #{tpu_custom_call.1} parent=1 // pred_check_branch
      %75 = sbr.rel (0) target = $region37
    $region36: #{tpu_custom_call.1} parent=1 // pred_region
      _
    $region37: #{tpu_custom_call.1} parent=1 // pred_fallthru
      _
    // Predicated region
    $region38: #{tpu_custom_call.1} parent=1 // pred_check
      _
    $region39: #{tpu_custom_call.1} parent=1 // pred_check_branch
      %77 = sbr.rel (0) target = $region41
    $region40: #{tpu_custom_call.1} parent=1 // pred_region
      _
    $region41: #{tpu_custom_call.1} parent=1 // pred_fallthru
      _
    // Predicated region
    $region42: #{tpu_custom_call.1} parent=1 // pred_check
      _
    $region43: #{tpu_custom_call.1} parent=1 // pred_check_branch
      %79 = sbr.rel (0) target = $region45
    $region44: #{tpu_custom_call.1} parent=1 // pred_region
      _
    $region45: #{tpu_custom_call.1} parent=1 // pred_fallthru
      _
    // Predicated region
    $region46: #{tpu_custom_call.1} parent=1 // pred_check
      _
    $region47: #{tpu_custom_call.1} parent=1 // pred_check_branch
      %81 = sbr.rel (0) target = $region49
    $region48: #{tpu_custom_call.1} parent=1 // pred_region
      %82 = dma.done [#allocation3], 16128
    $region49: #{tpu_custom_call.1} parent=1 // pred_fallthru
      _
    // Predicated region
    $region50: #{tpu_custom_call.1} parent=1 // pred_check
      _
    $region51: #{tpu_custom_call.1} parent=1 // pred_check_branch
      %84 = sbr.rel (0) target = $region53
    $region52: #{tpu_custom_call.1} parent=1 // pred_region
      %85 = dma.done [#allocation6], 8192
    $region53: #{tpu_custom_call.1} parent=1 // pred_fallthru
      _
    // Predicated region
    $region54: #{tpu_custom_call.1} parent=1 // pred_check
      _
    $region55: #{tpu_custom_call.1} parent=1 // pred_check_branch
      %87 = sbr.rel (0) target = $region57
    $region56: #{tpu_custom_call.1} parent=1 // pred_region
      %88 = dma.done [#allocation6], 4096
    $region57: #{tpu_custom_call.1} parent=1 // pred_fallthru
      _
    // Predicated region
    $region58: #{tpu_custom_call.1} parent=1 // pred_check
      _
    $region59: #{tpu_custom_call.1} parent=1 // pred_check_branch
      %90 = sbr.rel (0) target = $region61
    $region60: #{tpu_custom_call.1} parent=1 // pred_region
      %91 = dma.done [#allocation9], 16
    $region61: #{tpu_custom_call.1} parent=1 // pred_fallthru
      _
    %v92 = vld [vmem:[%s0] sm:$0xff]
    %v93 = vld [vmem:[#allocation2] sm:$0xff]
    %v94 = vld [vmem:[#allocation2 + $0x8] sm:$0xff]
    %v95 = vld [vmem:[#allocation2 + $0x10] sm:$0xff]
    %v96 = vld [vmem:[#allocation2 + $0x18] sm:$0xff]
    %v97 = vld [vmem:[#allocation2 + $0x20] sm:$0xff]
    %v98 = vld [vmem:[#allocation2 + $0x28] sm:$0xff]
    %v99 = vld [vmem:[#allocation2 + $0x30] sm:$0xff]
    %v100 = vld [vmem:[#allocation2 + $0x38] sm:$0xff]
    %v101 = vld [vmem:[#allocation2 + $0x40] sm:$0xff]
    %v102 = vld [vmem:[#allocation2 + $0x48] sm:$0xff]
    %v103 = vld [vmem:[#allocation2 + $0x50] sm:$0xff]
    %v104 = vld [vmem:[#allocation2 + $0x58] sm:$0xff]
    %v105 = vld [vmem:[#allocation2 + $0x60] sm:$0xff]
    %v106 = vld [vmem:[#allocation2 + $0x68] sm:$0xff]
    %v107 = vld [vmem:[#allocation2 + $0x70] sm:$0xff]
    %v108 = vld [vmem:[#allocation2 + $0x78] sm:$0xff]
    %v109 = vld [vmem:[#allocation2 + $0x80] sm:$0xff]
    %v110 = vld [vmem:[#allocation2 + $0x88] sm:$0xff]
    %v111 = vld [vmem:[#allocation2 + $0x90] sm:$0xff]
    %v112 = vld [vmem:[#allocation2 + $0x98] sm:$0xff]
    %v113 = vld [vmem:[#allocation2 + $0xa0] sm:$0xff]
    %v114 = vld [vmem:[#allocation2 + $0xa8] sm:$0xff]
    %v115 = vld [vmem:[#allocation2 + $0xb0] sm:$0xff]
    %v116 = vld [vmem:[#allocation2 + $0xb8] sm:$0xff]
    %v117 = vld [vmem:[#allocation2 + $0xc0] sm:$0xff]
    %v118 = vld [vmem:[#allocation2 + $0xc8] sm:$0xff]
    %v119 = vld [vmem:[#allocation2 + $0xd0] sm:$0xff]
    %v120 = vld [vmem:[#allocation2 + $0xd8] sm:$0xff]
    %v121 = vld [vmem:[#allocation2 + $0xe0] sm:$0xff]
    %v122 = vld [vmem:[#allocation2 + $0xe8] sm:$0xff]
    %v123 = vld [vmem:[#allocation2 + $0xf0] sm:$0xff]
    %v124 = vld [vmem:[#allocation2 + $0xf8] sm:$0xff]
    %v125 = vld [vmem:[#allocation2 + $0x100] sm:$0xff]
    %v126 = vld [vmem:[#allocation2 + $0x108] sm:$0xff]
    %v127 = vld [vmem:[#allocation2 + $0x110] sm:$0xff]
    %v128 = vld [vmem:[#allocation2 + $0x118] sm:$0xff]
    %v129 = vld [vmem:[#allocation2 + $0x120] sm:$0xff]
    %v130 = vld [vmem:[#allocation2 + $0x128] sm:$0xff]
    %v131 = vld [vmem:[#allocation2 + $0x130] sm:$0xff]
    %v132 = vld [vmem:[#allocation2 + $0x138] sm:$0xff]
    %v133 = vld [vmem:[#allocation2 + $0x140] sm:$0xff]
    %v134 = vld [vmem:[#allocation2 + $0x148] sm:$0xff]
    %v135 = vld [vmem:[#allocation2 + $0x150] sm:$0xff]
    %v136 = vld [vmem:[#allocation2 + $0x158] sm:$0xff]
    %v137 = vld [vmem:[#allocation2 + $0x160] sm:$0xff]
    %v138 = vld [vmem:[#allocation2 + $0x168] sm:$0xff]
    %v139 = vld [vmem:[#allocation2 + $0x170] sm:$0xff]
    %v140 = vld [vmem:[#allocation2 + $0x178] sm:$0xff]
    %v141 = vld [vmem:[#allocation2 + $0x180] sm:$0xff]
    %v142 = vld [vmem:[#allocation2 + $0x188] sm:$0xff]
    %v143 = vld [vmem:[#allocation2 + $0x190] sm:$0xff]
    %v144 = vld [vmem:[#allocation2 + $0x198] sm:$0xff]
    %v145 = vld [vmem:[#allocation2 + $0x1a0] sm:$0xff]
    %v146 = vld [vmem:[#allocation2 + $0x1a8] sm:$0xff]
    %v147 = vld [vmem:[#allocation2 + $0x1b0] sm:$0xff]
    %v148 = vld [vmem:[#allocation2 + $0x1b8] sm:$0xff]
    %v149 = vld [vmem:[#allocation2 + $0x1c0] sm:$0xff]
    %v150 = vld [vmem:[#allocation2 + $0x1c8] sm:$0xff]
    %v151 = vld [vmem:[#allocation2 + $0x1d0] sm:$0xff]
    %v152 = vld [vmem:[#allocation2 + $0x1d8] sm:$0xff]
    %v153 = vld [vmem:[#allocation2 + $0x1e0] sm:$0xff]
    %v154 = vld [vmem:[#allocation2 + $0x1e8] sm:$0xff]
    %v155 = vld [vmem:[#allocation2 + $0x1f0] sm:$0xff]
    %v156 = vld [vmem:[#allocation2 + $0x1f8] sm:$0xff]
    %v157 = vld [vmem:[#allocation2 + $0x200] sm:$0xff]
    %v158 = vld [vmem:[#allocation2 + $0x208] sm:$0xff]
    %v159 = vld [vmem:[#allocation2 + $0x210] sm:$0xff]
    %v160 = vld [vmem:[#allocation2 + $0x218] sm:$0xff]
    %v161 = vld [vmem:[#allocation2 + $0x220] sm:$0xff]
    %v162 = vld [vmem:[#allocation2 + $0x228] sm:$0xff]
    %v163 = vld [vmem:[#allocation2 + $0x230] sm:$0xff]
    %v164 = vld [vmem:[#allocation2 + $0x238] sm:$0xff]
    %v165 = vld [vmem:[#allocation2 + $0x240] sm:$0xff]
    %v166 = vld [vmem:[#allocation2 + $0x248] sm:$0xff]
    %v167 = vld [vmem:[#allocation2 + $0x250] sm:$0xff]
    %v168 = vld [vmem:[#allocation2 + $0x258] sm:$0xff]
    %v169 = vld [vmem:[#allocation2 + $0x260] sm:$0xff]
    %v170 = vld [vmem:[#allocation2 + $0x268] sm:$0xff]
    %v171 = vld [vmem:[#allocation2 + $0x270] sm:$0xff]
    %v172 = vld [vmem:[#allocation2 + $0x278] sm:$0xff]
    %v173 = vld [vmem:[#allocation2 + $0x280] sm:$0xff]
    %v174 = vld [vmem:[#allocation2 + $0x288] sm:$0xff]
    %v175 = vld [vmem:[#allocation2 + $0x290] sm:$0xff]
    %v176 = vld [vmem:[#allocation2 + $0x298] sm:$0xff]
    %v177 = vld [vmem:[#allocation2 + $0x2a0] sm:$0xff]
    %v178 = vld [vmem:[#allocation2 + $0x2a8] sm:$0xff]
    %v179 = vld [vmem:[#allocation2 + $0x2b0] sm:$0xff]
    %v180 = vld [vmem:[#allocation2 + $0x2b8] sm:$0xff]
    %v181 = vld [vmem:[#allocation2 + $0x2c0] sm:$0xff]
    %v182 = vld [vmem:[#allocation2 + $0x2c8] sm:$0xff]
    %v183 = vld [vmem:[#allocation2 + $0x2d0] sm:$0xff]
    %v184 = vld [vmem:[#allocation2 + $0x2d8] sm:$0xff]
    %v185 = vld [vmem:[#allocation2 + $0x2e0] sm:$0xff]
    %v186 = vld [vmem:[#allocation2 + $0x2e8] sm:$0xff]
    %v187 = vld [vmem:[#allocation2 + $0x2f0] sm:$0xff]
    %v188 = vld [vmem:[#allocation2 + $0x2f8] sm:$0xff]
    %v189 = vld [vmem:[#allocation2 + $0x300] sm:$0xff]
    %v190 = vld [vmem:[#allocation2 + $0x308] sm:$0xff]
    %v191 = vld [vmem:[#allocation2 + $0x310] sm:$0xff]
    %v192 = vld [vmem:[#allocation2 + $0x318] sm:$0xff]
    %v193 = vld [vmem:[#allocation2 + $0x320] sm:$0xff]
    %v194 = vld [vmem:[#allocation2 + $0x328] sm:$0xff]
    %v195 = vld [vmem:[#allocation2 + $0x330] sm:$0xff]
    %v196 = vld [vmem:[#allocation2 + $0x338] sm:$0xff]
    %v197 = vld [vmem:[#allocation2 + $0x340] sm:$0xff]
    %v198 = vld [vmem:[#allocation2 + $0x348] sm:$0xff]
    %v199 = vld [vmem:[#allocation2 + $0x350] sm:$0xff]
    %v200 = vld [vmem:[#allocation2 + $0x358] sm:$0xff]
    %v201 = vld [vmem:[#allocation2 + $0x360] sm:$0xff]
    %v202 = vld [vmem:[#allocation2 + $0x368] sm:$0xff]
    %v203 = vld [vmem:[#allocation2 + $0x370] sm:$0xff]
    %v204 = vld [vmem:[#allocation2 + $0x378] sm:$0xff]
    %v205 = vld [vmem:[#allocation2 + $0x380] sm:$0xff]
    %v206 = vld [vmem:[#allocation2 + $0x388] sm:$0xff]
    %v207 = vld [vmem:[#allocation2 + $0x390] sm:$0xff]
    %v208 = vld [vmem:[#allocation2 + $0x398] sm:$0xff]
    %v209 = vld [vmem:[#allocation2 + $0x3a0] sm:$0xff]
    %v210 = vld [vmem:[#allocation2 + $0x3a8] sm:$0xff]
    %v211 = vld [vmem:[#allocation2 + $0x3b0] sm:$0xff]
    %v212 = vld [vmem:[#allocation2 + $0x3b8] sm:$0xff]
    %v213 = vld [vmem:[#allocation2 + $0x3c0] sm:$0xff]
    %v214 = vld [vmem:[#allocation2 + $0x3c8] sm:$0xff]
    %v215 = vld [vmem:[#allocation2 + $0x3d0] sm:$0xff]
    %v216 = vld [vmem:[#allocation2 + $0x3d8] sm:$0xff]
    %v217 = vld [vmem:[#allocation2 + $0x3e0] sm:$0xff]
    %v218 = vld [vmem:[#allocation2 + $0x3e8] sm:$0xff]
    %v219 = vld [vmem:[%s2] sm:$0x3]
    %v221 = vlaneseq
    %v222 = vshrl.u32 %v221, 7
    %v223 = vsub.s32 0, %v222
    %v224 = vrot.slane %v219, %v223
    %v225 = vlaneseq
    %v226 = vshrl.u32 %v225, 7
    %v227 = vsub.s32 1, %v226
    %v228 = vrot.slane %v219, %v227
    %v232 = vcombine.high %v92, %v92
    %v234 = vunpack.c.l.s4 1983009808
    %v235 = vunpack.c.0.s8 %v234
    %v236 = vlaneseq
    %v237 = vshrl.u32 %v236, 7
    %v238 = vsub.s32 %v235, %v237
    %v239 = vrot.slane %v92, %v238
    %v241 = vunpack.c.l.s4 1983009808
    %v242 = vunpack.c.0.s8 %v241
    %v243 = vlaneseq
    %v244 = vshrl.u32 %v243, 7
    %v245 = vsub.s32 %v242, %v244
    %v246 = vrot.slane %v232, %v245
    %v247 = vcombine.high %v239, %v239
    %v248 = vcombine.high %v246, %v246
    %vm252 = vcmask 982016
    %v253 = vsel %vm252, %v248, 0
    %255 = vmatprep.subr.mxu0 %v124
    %256 = vmatpush1.msra.mxu0 %v123
    %257 = vmatprep.subr.mxu0 %v122
    %258 = vmatpush1.msra.mxu0 %v121
    %259 = vmatprep.subr.mxu0 %v120
    %260 = vmatpush1.msra.mxu0 %v119
    %261 = vmatprep.subr.mxu0 %v118
    %262 = vmatpush1.msra.mxu0 %v117
    %263 = vmatprep.subr.mxu0 %v116
    %264 = vmatpush1.msra.mxu0 %v115
    %265 = vmatprep.subr.mxu0 %v114
    %266 = vmatpush1.msra.mxu0 %v113
    %267 = vmatprep.subr.mxu0 %v112
    %268 = vmatpush1.msra.mxu0 %v111
    %269 = vmatprep.subr.mxu0 %v110
    %270 = vmatpush1.msra.mxu0 %v109
    %271 = vmatprep.subr.mxu0 %v108
    %272 = vmatpush1.msra.mxu0 %v107
    %273 = vmatprep.subr.mxu0 %v106
    %274 = vmatpush1.msra.mxu0 %v105
    %275 = vmatprep.subr.mxu0 %v104
    %276 = vmatpush1.msra.mxu0 %v103
    %277 = vmatprep.subr.mxu0 %v102
    %278 = vmatpush1.msra.mxu0 %v101
    %279 = vmatprep.subr.mxu0 %v100
    %280 = vmatpush1.msra.mxu0 %v99
    %281 = vmatprep.subr.mxu0 %v98
    %282 = vmatpush1.msra.mxu0 %v97
    %283 = vmatprep.subr.mxu0 %v96
    %284 = vmatpush1.msra.mxu0 %v95
    %285 = vmatprep.subr.mxu0 %v94
    %286 = vmatpush1.msra.mxu0 %v93
    %287 = vmatprep.subr.mxu0 %v156
    %288 = vmatpush2.msra.mxu0 %v155
    %289 = vmatprep.subr.mxu0 %v154
    %290 = vmatpush2.msra.mxu0 %v153
    %291 = vmatprep.subr.mxu0 %v152
    %292 = vmatpush2.msra.mxu0 %v151
    %293 = vmatprep.subr.mxu0 %v150
    %294 = vmatpush2.msra.mxu0 %v149
    %295 = vmatprep.subr.mxu0 %v148
    %296 = vmatpush2.msra.mxu0 %v147
    %297 = vmatprep.subr.mxu0 %v146
    %298 = vmatpush2.msra.mxu0 %v145
    %299 = vmatprep.subr.mxu0 %v144
    %300 = vmatpush2.msra.mxu0 %v143
    %301 = vmatprep.subr.mxu0 %v142
    %302 = vmatpush2.msra.mxu0 %v141
    %303 = vmatprep.subr.mxu0 %v140
    %304 = vmatpush2.msra.mxu0 %v139
    %305 = vmatprep.subr.mxu0 %v138
    %306 = vmatpush2.msra.mxu0 %v137
    %307 = vmatprep.subr.mxu0 %v136
    %308 = vmatpush2.msra.mxu0 %v135
    %309 = vmatprep.subr.mxu0 %v134
    %310 = vmatpush2.msra.mxu0 %v133
    %311 = vmatprep.subr.mxu0 %v132
    %312 = vmatpush2.msra.mxu0 %v131
    %313 = vmatprep.subr.mxu0 %v130
    %314 = vmatpush2.msra.mxu0 %v129
    %315 = vmatprep.subr.mxu0 %v128
    %316 = vmatpush2.msra.mxu0 %v127
    %317 = vmatprep.subr.mxu0 %v126
    %318 = vmatpush2.msra.mxu0 %v125
    %319 = vmatprep.mubr.f32.mxu0 %v247
    %320 = vmatmul.mubr.f32.gmra.mxu0 %v239
    %v321 = vpop.f32.mrf.mxu0
    %v322 = vadd.f32 %v224, %v321
    %v323 = vpop.f32.mrf.mxu0
    %v324 = vadd.f32 %v228, %v323
    %325 = vdwg.mxu0
    %326 = vmatprep.subr.mxu0 %v188
    %327 = vmatpush1.msra.mxu0 %v187
    %328 = vmatprep.subr.mxu0 %v186
    %329 = vmatpush1.msra.mxu0 %v185
    %330 = vmatprep.subr.mxu0 %v184
    %331 = vmatpush1.msra.mxu0 %v183
    %332 = vmatprep.subr.mxu0 %v182
    %333 = vmatpush1.msra.mxu0 %v181
    %334 = vmatprep.subr.mxu0 %v180
    %335 = vmatpush1.msra.mxu0 %v179
    %336 = vmatprep.subr.mxu0 %v178
    %337 = vmatpush1.msra.mxu0 %v177
    %338 = vmatprep.subr.mxu0 %v176
    %339 = vmatpush1.msra.mxu0 %v175
    %340 = vmatprep.subr.mxu0 %v174
    %341 = vmatpush1.msra.mxu0 %v173
    %342 = vmatprep.subr.mxu0 %v172
    %343 = vmatpush1.msra.mxu0 %v171
    %344 = vmatprep.subr.mxu0 %v170
    %345 = vmatpush1.msra.mxu0 %v169
    %346 = vmatprep.subr.mxu0 %v168
    %347 = vmatpush1.msra.mxu0 %v167
    %348 = vmatprep.subr.mxu0 %v166
    %349 = vmatpush1.msra.mxu0 %v165
    %350 = vmatprep.subr.mxu0 %v164
    %351 = vmatpush1.msra.mxu0 %v163
    %352 = vmatprep.subr.mxu0 %v162
    %353 = vmatpush1.msra.mxu0 %v161
    %354 = vmatprep.subr.mxu0 %v160
    %355 = vmatpush1.msra.mxu0 %v159
    %356 = vmatprep.subr.mxu0 %v158
    %357 = vmatpush1.msra.mxu0 %v157
    %358 = vmatprep.subr.mxu0 0.0
    %359 = vmatpush2.msra.mxu0 0.0
    %360 = vmatprep.subr.mxu0 %v218
    %361 = vmatpush2.msra.mxu0 %v217
    %362 = vmatprep.subr.mxu0 %v216
    %363 = vmatpush2.msra.mxu0 %v215
    %364 = vmatprep.subr.mxu0 %v214
    %365 = vmatpush2.msra.mxu0 %v213
    %366 = vmatprep.subr.mxu0 %v212
    %367 = vmatpush2.msra.mxu0 %v211
    %368 = vmatprep.subr.mxu0 %v210
    %369 = vmatpush2.msra.mxu0 %v209
    %370 = vmatprep.subr.mxu0 %v208
    %371 = vmatpush2.msra.mxu0 %v207
    %372 = vmatprep.subr.mxu0 %v206
    %373 = vmatpush2.msra.mxu0 %v205
    %374 = vmatprep.subr.mxu0 %v204
    %375 = vmatpush2.msra.mxu0 %v203
    %376 = vmatprep.subr.mxu0 %v202
    %377 = vmatpush2.msra.mxu0 %v201
    %378 = vmatprep.subr.mxu0 %v200
    %379 = vmatpush2.msra.mxu0 %v199
    %380 = vmatprep.subr.mxu0 %v198
    %381 = vmatpush2.msra.mxu0 %v197
    %382 = vmatprep.subr.mxu0 %v196
    %383 = vmatpush2.msra.mxu0 %v195
    %384 = vmatprep.subr.mxu0 %v194
    %385 = vmatpush2.msra.mxu0 %v193
    %386 = vmatprep.subr.mxu0 %v192
    %387 = vmatpush2.msra.mxu0 %v191
    %388 = vmatprep.subr.mxu0 %v190
    %389 = vmatpush2.msra.mxu0 %v189
    %390 = vmatprep.mubr.f32.mxu0 %v253
    %391 = vmatmul.mubr.f32.gmra.mxu0 %v246
    %v392 = vpop.f32.mrf.mxu0
    %v393 = vadd.f32 %v322, %v392
    %v394 = vpop.f32.mrf.mxu0
    %v395 = vadd.f32 %v324, %v394
    %396 = vdwg.mxu0
    %v397 = vmax.f32 %v393, 0.0
    %v398 = vmax.f32 %v395, 0.0
    %v399 = vld [vmem:[#allocation5] sm:$0xff]
    %v400 = vld [vmem:[#allocation5 + $0x8] sm:$0xff]
    %v401 = vld [vmem:[#allocation5 + $0x10] sm:$0xff]
    %v402 = vld [vmem:[#allocation5 + $0x18] sm:$0xff]
    %v403 = vld [vmem:[#allocation5 + $0x20] sm:$0xff]
    %v404 = vld [vmem:[#allocation5 + $0x28] sm:$0xff]
    %v405 = vld [vmem:[#allocation5 + $0x30] sm:$0xff]
    %v406 = vld [vmem:[#allocation5 + $0x38] sm:$0xff]
    %v407 = vld [vmem:[#allocation5 + $0x40] sm:$0xff]
    %v408 = vld [vmem:[#allocation5 + $0x48] sm:$0xff]
    %v409 = vld [vmem:[#allocation5 + $0x50] sm:$0xff]
    %v410 = vld [vmem:[#allocation5 + $0x58] sm:$0xff]
    %v411 = vld [vmem:[#allocation5 + $0x60] sm:$0xff]
    %v412 = vld [vmem:[#allocation5 + $0x68] sm:$0xff]
    %v413 = vld [vmem:[#allocation5 + $0x70] sm:$0xff]
    %v414 = vld [vmem:[#allocation5 + $0x78] sm:$0xff]
    %v415 = vld [vmem:[#allocation5 + $0x80] sm:$0xff]
    %v416 = vld [vmem:[#allocation5 + $0x88] sm:$0xff]
    %v417 = vld [vmem:[#allocation5 + $0x90] sm:$0xff]
    %v418 = vld [vmem:[#allocation5 + $0x98] sm:$0xff]
    %v419 = vld [vmem:[#allocation5 + $0xa0] sm:$0xff]
    %v420 = vld [vmem:[#allocation5 + $0xa8] sm:$0xff]
    %v421 = vld [vmem:[#allocation5 + $0xb0] sm:$0xff]
    %v422 = vld [vmem:[#allocation5 + $0xb8] sm:$0xff]
    %v423 = vld [vmem:[#allocation5 + $0xc0] sm:$0xff]
    %v424 = vld [vmem:[#allocation5 + $0xc8] sm:$0xff]
    %v425 = vld [vmem:[#allocation5 + $0xd0] sm:$0xff]
    %v426 = vld [vmem:[#allocation5 + $0xd8] sm:$0xff]
    %v427 = vld [vmem:[#allocation5 + $0xe0] sm:$0xff]
    %v428 = vld [vmem:[#allocation5 + $0xe8] sm:$0xff]
    %v429 = vld [vmem:[#allocation5 + $0xf0] sm:$0xff]
    %v430 = vld [vmem:[#allocation5 + $0xf8] sm:$0xff]
    %v431 = vld [vmem:[#allocation5 + $0x100] sm:$0xff]
    %v432 = vld [vmem:[#allocation5 + $0x108] sm:$0xff]
    %v433 = vld [vmem:[#allocation5 + $0x110] sm:$0xff]
    %v434 = vld [vmem:[#allocation5 + $0x118] sm:$0xff]
    %v435 = vld [vmem:[#allocation5 + $0x120] sm:$0xff]
    %v436 = vld [vmem:[#allocation5 + $0x128] sm:$0xff]
    %v437 = vld [vmem:[#allocation5 + $0x130] sm:$0xff]
    %v438 = vld [vmem:[#allocation5 + $0x138] sm:$0xff]
    %v439 = vld [vmem:[#allocation5 + $0x140] sm:$0xff]
    %v440 = vld [vmem:[#allocation5 + $0x148] sm:$0xff]
    %v441 = vld [vmem:[#allocation5 + $0x150] sm:$0xff]
    %v442 = vld [vmem:[#allocation5 + $0x158] sm:$0xff]
    %v443 = vld [vmem:[#allocation5 + $0x160] sm:$0xff]
    %v444 = vld [vmem:[#allocation5 + $0x168] sm:$0xff]
    %v445 = vld [vmem:[#allocation5 + $0x170] sm:$0xff]
    %v446 = vld [vmem:[#allocation5 + $0x178] sm:$0xff]
    %v447 = vld [vmem:[#allocation5 + $0x180] sm:$0xff]
    %v448 = vld [vmem:[#allocation5 + $0x188] sm:$0xff]
    %v449 = vld [vmem:[#allocation5 + $0x190] sm:$0xff]
    %v450 = vld [vmem:[#allocation5 + $0x198] sm:$0xff]
    %v451 = vld [vmem:[#allocation5 + $0x1a0] sm:$0xff]
    %v452 = vld [vmem:[#allocation5 + $0x1a8] sm:$0xff]
    %v453 = vld [vmem:[#allocation5 + $0x1b0] sm:$0xff]
    %v454 = vld [vmem:[#allocation5 + $0x1b8] sm:$0xff]
    %v455 = vld [vmem:[#allocation5 + $0x1c0] sm:$0xff]
    %v456 = vld [vmem:[#allocation5 + $0x1c8] sm:$0xff]
    %v457 = vld [vmem:[#allocation5 + $0x1d0] sm:$0xff]
    %v458 = vld [vmem:[#allocation5 + $0x1d8] sm:$0xff]
    %v459 = vld [vmem:[#allocation5 + $0x1e0] sm:$0xff]
    %v460 = vld [vmem:[#allocation5 + $0x1e8] sm:$0xff]
    %v461 = vld [vmem:[#allocation5 + $0x1f0] sm:$0xff]
    %v462 = vld [vmem:[#allocation5 + $0x1f8] sm:$0xff]
    %463 = vmatprep.subr.mxu0 %v430
    %464 = vmatpush1.msra.mxu0 %v429
    %465 = vmatprep.subr.mxu0 %v428
    %466 = vmatpush1.msra.mxu0 %v427
    %467 = vmatprep.subr.mxu0 %v426
    %468 = vmatpush1.msra.mxu0 %v425
    %469 = vmatprep.subr.mxu0 %v424
    %470 = vmatpush1.msra.mxu0 %v423
    %471 = vmatprep.subr.mxu0 %v422
    %472 = vmatpush1.msra.mxu0 %v421
    %473 = vmatprep.subr.mxu0 %v420
    %474 = vmatpush1.msra.mxu0 %v419
    %475 = vmatprep.subr.mxu0 %v418
    %476 = vmatpush1.msra.mxu0 %v417
    %477 = vmatprep.subr.mxu0 %v416
    %478 = vmatpush1.msra.mxu0 %v415
    %479 = vmatprep.subr.mxu0 %v414
    %480 = vmatpush1.msra.mxu0 %v413
    %481 = vmatprep.subr.mxu0 %v412
    %482 = vmatpush1.msra.mxu0 %v411
    %483 = vmatprep.subr.mxu0 %v410
    %484 = vmatpush1.msra.mxu0 %v409
    %485 = vmatprep.subr.mxu0 %v408
    %486 = vmatpush1.msra.mxu0 %v407
    %487 = vmatprep.subr.mxu0 %v406
    %488 = vmatpush1.msra.mxu0 %v405
    %489 = vmatprep.subr.mxu0 %v404
    %490 = vmatpush1.msra.mxu0 %v403
    %491 = vmatprep.subr.mxu0 %v402
    %492 = vmatpush1.msra.mxu0 %v401
    %493 = vmatprep.subr.mxu0 %v400
    %494 = vmatpush1.msra.mxu0 %v399
    %495 = vmatprep.subr.mxu0 %v462
    %496 = vmatpush2.msra.mxu0 %v461
    %497 = vmatprep.subr.mxu0 %v460
    %498 = vmatpush2.msra.mxu0 %v459
    %499 = vmatprep.subr.mxu0 %v458
    %500 = vmatpush2.msra.mxu0 %v457
    %501 = vmatprep.subr.mxu0 %v456
    %502 = vmatpush2.msra.mxu0 %v455
    %503 = vmatprep.subr.mxu0 %v454
    %504 = vmatpush2.msra.mxu0 %v453
    %505 = vmatprep.subr.mxu0 %v452
    %506 = vmatpush2.msra.mxu0 %v451
    %507 = vmatprep.subr.mxu0 %v450
    %508 = vmatpush2.msra.mxu0 %v449
    %509 = vmatprep.subr.mxu0 %v448
    %510 = vmatpush2.msra.mxu0 %v447
    %511 = vmatprep.subr.mxu0 %v446
    %512 = vmatpush2.msra.mxu0 %v445
    %513 = vmatprep.subr.mxu0 %v444
    %514 = vmatpush2.msra.mxu0 %v443
    %515 = vmatprep.subr.mxu0 %v442
    %516 = vmatpush2.msra.mxu0 %v441
    %517 = vmatprep.subr.mxu0 %v440
    %518 = vmatpush2.msra.mxu0 %v439
    %519 = vmatprep.subr.mxu0 %v438
    %520 = vmatpush2.msra.mxu0 %v437
    %521 = vmatprep.subr.mxu0 %v436
    %522 = vmatpush2.msra.mxu0 %v435
    %523 = vmatprep.subr.mxu0 %v434
    %524 = vmatpush2.msra.mxu0 %v433
    %525 = vmatprep.subr.mxu0 %v432
    %526 = vmatpush2.msra.mxu0 %v431
    %527 = vmatprep.mubr.f32.mxu0 %v398
    %528 = vmatmul.mubr.f32.gmra.mxu0 %v397
    %v529 = vpop.f32.mrf.mxu0
    %v530 = vadd.f32 0.0, %v529
    %v531 = vpop.f32.mrf.mxu0
    %v532 = vadd.f32 0.0, %v531
    %533 = vdwg.mxu0
    %v534 = vmax.f32 %v397, %v530
    %v535 = vmax.f32 %v398, %v532
    %v536 = vld [vmem:[#allocation7] sm:$0xff]
    %v537 = vld [vmem:[#allocation7 + $0x8] sm:$0xff]
    %v538 = vld [vmem:[#allocation7 + $0x10] sm:$0xff]
    %v539 = vld [vmem:[#allocation7 + $0x18] sm:$0xff]
    %v540 = vld [vmem:[#allocation7 + $0x20] sm:$0xff]
    %v541 = vld [vmem:[#allocation7 + $0x28] sm:$0xff]
    %v542 = vld [vmem:[#allocation7 + $0x30] sm:$0xff]
    %v543 = vld [vmem:[#allocation7 + $0x38] sm:$0xff]
    %v544 = vld [vmem:[#allocation7 + $0x40] sm:$0xff]
    %v545 = vld [vmem:[#allocation7 + $0x48] sm:$0xff]
    %v546 = vld [vmem:[#allocation7 + $0x50] sm:$0xff]
    %v547 = vld [vmem:[#allocation7 + $0x58] sm:$0xff]
    %v548 = vld [vmem:[#allocation7 + $0x60] sm:$0xff]
    %v549 = vld [vmem:[#allocation7 + $0x68] sm:$0xff]
    %v550 = vld [vmem:[#allocation7 + $0x70] sm:$0xff]
    %v551 = vld [vmem:[#allocation7 + $0x78] sm:$0xff]
    %v552 = vld [vmem:[#allocation7 + $0x80] sm:$0xff]
    %v553 = vld [vmem:[#allocation7 + $0x88] sm:$0xff]
    %v554 = vld [vmem:[#allocation7 + $0x90] sm:$0xff]
    %v555 = vld [vmem:[#allocation7 + $0x98] sm:$0xff]
    %v556 = vld [vmem:[#allocation7 + $0xa0] sm:$0xff]
    %v557 = vld [vmem:[#allocation7 + $0xa8] sm:$0xff]
    %v558 = vld [vmem:[#allocation7 + $0xb0] sm:$0xff]
    %v559 = vld [vmem:[#allocation7 + $0xb8] sm:$0xff]
    %v560 = vld [vmem:[#allocation7 + $0xc0] sm:$0xff]
    %v561 = vld [vmem:[#allocation7 + $0xc8] sm:$0xff]
    %v562 = vld [vmem:[#allocation7 + $0xd0] sm:$0xff]
    %v563 = vld [vmem:[#allocation7 + $0xd8] sm:$0xff]
    %v564 = vld [vmem:[#allocation7 + $0xe0] sm:$0xff]
    %v565 = vld [vmem:[#allocation7 + $0xe8] sm:$0xff]
    %v566 = vld [vmem:[#allocation7 + $0xf0] sm:$0xff]
    %v567 = vld [vmem:[#allocation7 + $0xf8] sm:$0xff]
    %v568 = vld [vmem:[#allocation8] sm:$0x1]
    %v570 = vlaneseq
    %v571 = vshrl.u32 %v570, 7
    %v572 = vsub.s32 0, %v571
    %v573 = vrot.slane %v568, %v572
    %575 = vmatprep.subr.mxu0 0.0
    %576 = vmatpush1.msra.mxu0 %v551
    %577 = vmatprep.subr.mxu0 0.0
    %578 = vmatpush1.msra.mxu0 %v550
    %579 = vmatprep.subr.mxu0 0.0
    %580 = vmatpush1.msra.mxu0 %v549
    %581 = vmatprep.subr.mxu0 0.0
    %582 = vmatpush1.msra.mxu0 %v548
    %583 = vmatprep.subr.mxu0 0.0
    %584 = vmatpush1.msra.mxu0 %v547
    %585 = vmatprep.subr.mxu0 0.0
    %586 = vmatpush1.msra.mxu0 %v546
    %587 = vmatprep.subr.mxu0 0.0
    %588 = vmatpush1.msra.mxu0 %v545
    %589 = vmatprep.subr.mxu0 0.0
    %590 = vmatpush1.msra.mxu0 %v544
    %591 = vmatprep.subr.mxu0 0.0
    %592 = vmatpush1.msra.mxu0 %v543
    %593 = vmatprep.subr.mxu0 0.0
    %594 = vmatpush1.msra.mxu0 %v542
    %595 = vmatprep.subr.mxu0 0.0
    %596 = vmatpush1.msra.mxu0 %v541
    %597 = vmatprep.subr.mxu0 0.0
    %598 = vmatpush1.msra.mxu0 %v540
    %599 = vmatprep.subr.mxu0 0.0
    %600 = vmatpush1.msra.mxu0 %v539
    %601 = vmatprep.subr.mxu0 0.0
    %602 = vmatpush1.msra.mxu0 %v538
    %603 = vmatprep.subr.mxu0 0.0
    %604 = vmatpush1.msra.mxu0 %v537
    %605 = vmatprep.subr.mxu0 0.0
    %606 = vmatpush1.msra.mxu0 %v536
    %607 = vmatprep.subr.mxu0 0.0
    %608 = vmatpush2.msra.mxu0 %v567
    %609 = vmatprep.subr.mxu0 0.0
    %610 = vmatpush2.msra.mxu0 %v566
    %611 = vmatprep.subr.mxu0 0.0
    %612 = vmatpush2.msra.mxu0 %v565
    %613 = vmatprep.subr.mxu0 0.0
    %614 = vmatpush2.msra.mxu0 %v564
    %615 = vmatprep.subr.mxu0 0.0
    %616 = vmatpush2.msra.mxu0 %v563
    %617 = vmatprep.subr.mxu0 0.0
    %618 = vmatpush2.msra.mxu0 %v562
    %619 = vmatprep.subr.mxu0 0.0
    %620 = vmatpush2.msra.mxu0 %v561
    %621 = vmatprep.subr.mxu0 0.0
    %622 = vmatpush2.msra.mxu0 %v560
    %623 = vmatprep.subr.mxu0 0.0
    %624 = vmatpush2.msra.mxu0 %v559
    %625 = vmatprep.subr.mxu0 0.0
    %626 = vmatpush2.msra.mxu0 %v558
    %627 = vmatprep.subr.mxu0 0.0
    %628 = vmatpush2.msra.mxu0 %v557
    %629 = vmatprep.subr.mxu0 0.0
    %630 = vmatpush2.msra.mxu0 %v556
    %631 = vmatprep.subr.mxu0 0.0
    %632 = vmatpush2.msra.mxu0 %v555
    %633 = vmatprep.subr.mxu0 0.0
    %634 = vmatpush2.msra.mxu0 %v554
    %635 = vmatprep.subr.mxu0 0.0
    %636 = vmatpush2.msra.mxu0 %v553
    %637 = vmatprep.subr.mxu0 0.0
    %638 = vmatpush2.msra.mxu0 %v552
    %639 = vmatprep.mubr.f32.mxu0 %v535
    %640 = vmatmul.mubr.f32.gmra.mxu0 %v534
    %v641 = vpop.f32.mrf.mxu0
    %v642 = vadd.f32 %v573, %v641
    %v643 = vpop.f32.mrf.mxu0
    %644 = vdwg.mxu0
    %v645 = vmax.f32 %v642, 0.0
    %v646 = vld [vmem:[%s6] sm:$0xff]
    %v647 = vld [vmem:[%s6 + $0x8] sm:$0xff]
    %v648 = vld [vmem:[%s6 + $0x10] sm:$0xff]
    %v649 = vld [vmem:[%s6 + $0x18] sm:$0xff]
    %v650 = vld [vmem:[%s6 + $0x20] sm:$0xff]
    %v651 = vld [vmem:[%s6 + $0x28] sm:$0xff]
    %v652 = vld [vmem:[%s6 + $0x30] sm:$0xff]
    %v653 = vld [vmem:[%s6 + $0x38] sm:$0xff]
    %v654 = vld [vmem:[%s6 + $0x40] sm:$0xff]
    %v655 = vld [vmem:[%s6 + $0x48] sm:$0xff]
    %v656 = vld [vmem:[%s6 + $0x50] sm:$0xff]
    %v657 = vld [vmem:[%s6 + $0x58] sm:$0xff]
    %v658 = vld [vmem:[%s6 + $0x60] sm:$0xff]
    %v659 = vld [vmem:[%s6 + $0x68] sm:$0xff]
    %v660 = vld [vmem:[%s6 + $0x70] sm:$0xff]
    %v661 = vld [vmem:[%s6 + $0x78] sm:$0xff]
    %662 = vmatprep.subr.mxu0 0.0
    %663 = vmatpush1.msra.mxu0 %v661
    %664 = vmatprep.subr.mxu0 0.0
    %665 = vmatpush1.msra.mxu0 %v660
    %666 = vmatprep.subr.mxu0 0.0
    %667 = vmatpush1.msra.mxu0 %v659
    %668 = vmatprep.subr.mxu0 0.0
    %669 = vmatpush1.msra.mxu0 %v658
    %670 = vmatprep.subr.mxu0 0.0
    %671 = vmatpush1.msra.mxu0 %v657
    %672 = vmatprep.subr.mxu0 0.0
    %673 = vmatpush1.msra.mxu0 %v656
    %674 = vmatprep.subr.mxu0 0.0
    %675 = vmatpush1.msra.mxu0 %v655
    %676 = vmatprep.subr.mxu0 0.0
    %677 = vmatpush1.msra.mxu0 %v654
    %678 = vmatprep.subr.mxu0 0.0
    %679 = vmatpush1.msra.mxu0 %v653
    %680 = vmatprep.subr.mxu0 0.0
    %681 = vmatpush1.msra.mxu0 %v652
    %682 = vmatprep.subr.mxu0 0.0
    %683 = vmatpush1.msra.mxu0 %v651
    %684 = vmatprep.subr.mxu0 0.0
    %685 = vmatpush1.msra.mxu0 %v650
    %686 = vmatprep.subr.mxu0 0.0
    %687 = vmatpush1.msra.mxu0 %v649
    %688 = vmatprep.subr.mxu0 0.0
    %689 = vmatpush1.msra.mxu0 %v648
    %690 = vmatprep.subr.mxu0 0.0
    %691 = vmatpush1.msra.mxu0 %v647
    %692 = vmatprep.subr.mxu0 0.0
    %693 = vmatpush1.msra.mxu0 %v646
    %694 = vmatprep.subr.mxu0 0.0
    %695 = vmatpush2.msra.mxu0 0.0
    %696 = vmatprep.subr.mxu0 0.0
    %697 = vmatpush2.msra.mxu0 0.0
    %698 = vmatprep.subr.mxu0 0.0
    %699 = vmatpush2.msra.mxu0 0.0
    %700 = vmatprep.subr.mxu0 0.0
    %701 = vmatpush2.msra.mxu0 0.0
    %702 = vmatprep.subr.mxu0 0.0
    %703 = vmatpush2.msra.mxu0 0.0
    %704 = vmatprep.subr.mxu0 0.0
    %705 = vmatpush2.msra.mxu0 0.0
    %706 = vmatprep.subr.mxu0 0.0
    %707 = vmatpush2.msra.mxu0 0.0
    %708 = vmatprep.subr.mxu0 0.0
    %709 = vmatpush2.msra.mxu0 0.0
    %710 = vmatprep.subr.mxu0 0.0
    %711 = vmatpush2.msra.mxu0 0.0
    %712 = vmatprep.subr.mxu0 0.0
    %713 = vmatpush2.msra.mxu0 0.0
    %714 = vmatprep.subr.mxu0 0.0
    %715 = vmatpush2.msra.mxu0 0.0
    %716 = vmatprep.subr.mxu0 0.0
    %717 = vmatpush2.msra.mxu0 0.0
    %718 = vmatprep.subr.mxu0 0.0
    %719 = vmatpush2.msra.mxu0 0.0
    %720 = vmatprep.subr.mxu0 0.0
    %721 = vmatpush2.msra.mxu0 0.0
    %722 = vmatprep.subr.mxu0 0.0
    %723 = vmatpush2.msra.mxu0 0.0
    %724 = vmatprep.subr.mxu0 0.0
    %725 = vmatpush2.msra.mxu0 0.0
    %726 = vmatprep.mubr.f32.mxu0 0.0
    %727 = vmatmul.mubr.f32.gmra.mxu0 %v645
    %v728 = vpop.f32.mrf.mxu0
    %v729 = vadd.f32 0.0, %v728
    %v730 = vpop.f32.mrf.mxu0
    %731 = vdwg.mxu0
    %v732 = vmax.f32 %v645, %v729
    %v733 = vld [vmem:[%s7] sm:$0xff]
    %v734 = vld [vmem:[%s7 + $0x8] sm:$0xff]
    %v735 = vld [vmem:[%s7 + $0x10] sm:$0xff]
    %v736 = vld [vmem:[%s7 + $0x18] sm:$0xff]
    %v737 = vld [vmem:[%s7 + $0x20] sm:$0xff]
    %v738 = vld [vmem:[%s7 + $0x28] sm:$0xff]
    %v739 = vld [vmem:[%s7 + $0x30] sm:$0xff]
    %v740 = vld [vmem:[%s7 + $0x38] sm:$0xff]
    %v741 = vld [vmem:[%s7 + $0x40] sm:$0xff]
    %v742 = vld [vmem:[%s7 + $0x48] sm:$0xff]
    %v743 = vld [vmem:[%s7 + $0x50] sm:$0xff]
    %v744 = vld [vmem:[%s7 + $0x58] sm:$0xff]
    %v745 = vld [vmem:[%s7 + $0x60] sm:$0xff]
    %v746 = vld [vmem:[%s7 + $0x68] sm:$0xff]
    %v747 = vld [vmem:[%s7 + $0x70] sm:$0xff]
    %v748 = vld [vmem:[%s7 + $0x78] sm:$0xff]
    %v749 = vld [vmem:[%s8] sm:$0x1]
    %v751 = vlaneseq
    %v752 = vshrl.u32 %v751, 7
    %v753 = vsub.s32 0, %v752
    %v754 = vrot.slane %v749, %v753
    %756 = vmatprep.subr.mxu0 0.0
    %757 = vmatpush1.msra.mxu0 %v748
    %758 = vmatprep.subr.mxu0 0.0
    %759 = vmatpush1.msra.mxu0 %v747
    %760 = vmatprep.subr.mxu0 0.0
    %761 = vmatpush1.msra.mxu0 %v746
    %762 = vmatprep.subr.mxu0 0.0
    %763 = vmatpush1.msra.mxu0 %v745
    %764 = vmatprep.subr.mxu0 0.0
    %765 = vmatpush1.msra.mxu0 %v744
    %766 = vmatprep.subr.mxu0 0.0
    %767 = vmatpush1.msra.mxu0 %v743
    %768 = vmatprep.subr.mxu0 0.0
    %769 = vmatpush1.msra.mxu0 %v742
    %770 = vmatprep.subr.mxu0 0.0
    %771 = vmatpush1.msra.mxu0 %v741
    %772 = vmatprep.subr.mxu0 0.0
    %773 = vmatpush1.msra.mxu0 %v740
    %774 = vmatprep.subr.mxu0 0.0
    %775 = vmatpush1.msra.mxu0 %v739
    %776 = vmatprep.subr.mxu0 0.0
    %777 = vmatpush1.msra.mxu0 %v738
    %778 = vmatprep.subr.mxu0 0.0
    %779 = vmatpush1.msra.mxu0 %v737
    %780 = vmatprep.subr.mxu0 0.0
    %781 = vmatpush1.msra.mxu0 %v736
    %782 = vmatprep.subr.mxu0 0.0
    %783 = vmatpush1.msra.mxu0 %v735
    %784 = vmatprep.subr.mxu0 0.0
    %785 = vmatpush1.msra.mxu0 %v734
    %786 = vmatprep.subr.mxu0 0.0
    %787 = vmatpush1.msra.mxu0 %v733
    %788 = vmatprep.subr.mxu0 0.0
    %789 = vmatpush2.msra.mxu0 0.0
    %790 = vmatprep.subr.mxu0 0.0
    %791 = vmatpush2.msra.mxu0 0.0
    %792 = vmatprep.subr.mxu0 0.0
    %793 = vmatpush2.msra.mxu0 0.0
    %794 = vmatprep.subr.mxu0 0.0
    %795 = vmatpush2.msra.mxu0 0.0
    %796 = vmatprep.subr.mxu0 0.0
    %797 = vmatpush2.msra.mxu0 0.0
    %798 = vmatprep.subr.mxu0 0.0
    %799 = vmatpush2.msra.mxu0 0.0
    %800 = vmatprep.subr.mxu0 0.0
    %801 = vmatpush2.msra.mxu0 0.0
    %802 = vmatprep.subr.mxu0 0.0
    %803 = vmatpush2.msra.mxu0 0.0
    %804 = vmatprep.subr.mxu0 0.0
    %805 = vmatpush2.msra.mxu0 0.0
    %806 = vmatprep.subr.mxu0 0.0
    %807 = vmatpush2.msra.mxu0 0.0
    %808 = vmatprep.subr.mxu0 0.0
    %809 = vmatpush2.msra.mxu0 0.0
    %810 = vmatprep.subr.mxu0 0.0
    %811 = vmatpush2.msra.mxu0 0.0
    %812 = vmatprep.subr.mxu0 0.0
    %813 = vmatpush2.msra.mxu0 0.0
    %814 = vmatprep.subr.mxu0 0.0
    %815 = vmatpush2.msra.mxu0 0.0
    %816 = vmatprep.subr.mxu0 0.0
    %817 = vmatpush2.msra.mxu0 0.0
    %818 = vmatprep.subr.mxu0 0.0
    %819 = vmatpush2.msra.mxu0 0.0
    %820 = vmatprep.mubr.f32.mxu0 0.0
    %821 = vmatmul.mubr.f32.gmra.mxu0 %v732
    %v822 = vpop.f32.mrf.mxu0
    %v823 = vadd.f32 %v754, %v822
    %v824 = vpop.f32.mrf.mxu0
    %825 = vdwg.mxu0
    %v826 = vmax.f32 %v823, 0.0
    %v827 = vld [vmem:[%s9] sm:$0xff]
    %v828 = vld [vmem:[%s9 + $0x8] sm:$0xff]
    %v829 = vld [vmem:[%s9 + $0x10] sm:$0xff]
    %v830 = vld [vmem:[%s9 + $0x18] sm:$0xff]
    %v831 = vld [vmem:[%s9 + $0x20] sm:$0xff]
    %v832 = vld [vmem:[%s9 + $0x28] sm:$0xff]
    %v833 = vld [vmem:[%s9 + $0x30] sm:$0xff]
    %v834 = vld [vmem:[%s9 + $0x38] sm:$0xff]
    %v835 = vld [vmem:[%s10] sm:$0x1]
    %v837 = vlaneseq
    %v838 = vshrl.u32 %v837, 7
    %v839 = vsub.s32 0, %v838
    %v840 = vrot.slane %v835, %v839
    %vm842 = vcmask 523264
    %v844 = vsel %vm842, %v826, 0
    %846 = vmatprep.subr.mxu0 0.0
    %847 = vmatpush1.msra.mxu0 0.0
    %848 = vmatprep.subr.mxu0 0.0
    %849 = vmatpush1.msra.mxu0 0.0
    %850 = vmatprep.subr.mxu0 0.0
    %851 = vmatpush1.msra.mxu0 0.0
    %852 = vmatprep.subr.mxu0 0.0
    %853 = vmatpush1.msra.mxu0 0.0
    %854 = vmatprep.subr.mxu0 0.0
    %855 = vmatpush1.msra.mxu0 0.0
    %856 = vmatprep.subr.mxu0 0.0
    %857 = vmatpush1.msra.mxu0 0.0
    %858 = vmatprep.subr.mxu0 0.0
    %859 = vmatpush1.msra.mxu0 0.0
    %860 = vmatprep.subr.mxu0 0.0
    %861 = vmatpush1.msra.mxu0 0.0
    %862 = vmatprep.subr.mxu0 0.0
    %863 = vmatpush1.msra.mxu0 %v834
    %864 = vmatprep.subr.mxu0 0.0
    %865 = vmatpush1.msra.mxu0 %v833
    %866 = vmatprep.subr.mxu0 0.0
    %867 = vmatpush1.msra.mxu0 %v832
    %868 = vmatprep.subr.mxu0 0.0
    %869 = vmatpush1.msra.mxu0 %v831
    %870 = vmatprep.subr.mxu0 0.0
    %871 = vmatpush1.msra.mxu0 %v830
    %872 = vmatprep.subr.mxu0 0.0
    %873 = vmatpush1.msra.mxu0 %v829
    %874 = vmatprep.subr.mxu0 0.0
    %875 = vmatpush1.msra.mxu0 %v828
    %876 = vmatprep.subr.mxu0 0.0
    %877 = vmatpush1.msra.mxu0 %v827
    %878 = vmatprep.subr.mxu0 0.0
    %879 = vmatpush2.msra.mxu0 0.0
    %880 = vmatprep.subr.mxu0 0.0
    %881 = vmatpush2.msra.mxu0 0.0
    %882 = vmatprep.subr.mxu0 0.0
    %883 = vmatpush2.msra.mxu0 0.0
    %884 = vmatprep.subr.mxu0 0.0
    %885 = vmatpush2.msra.mxu0 0.0
    %886 = vmatprep.subr.mxu0 0.0
    %887 = vmatpush2.msra.mxu0 0.0
    %888 = vmatprep.subr.mxu0 0.0
    %889 = vmatpush2.msra.mxu0 0.0
    %890 = vmatprep.subr.mxu0 0.0
    %891 = vmatpush2.msra.mxu0 0.0
    %892 = vmatprep.subr.mxu0 0.0
    %893 = vmatpush2.msra.mxu0 0.0
    %894 = vmatprep.subr.mxu0 0.0
    %895 = vmatpush2.msra.mxu0 0.0
    %896 = vmatprep.subr.mxu0 0.0
    %897 = vmatpush2.msra.mxu0 0.0
    %898 = vmatprep.subr.mxu0 0.0
    %899 = vmatpush2.msra.mxu0 0.0
    %900 = vmatprep.subr.mxu0 0.0
    %901 = vmatpush2.msra.mxu0 0.0
    %902 = vmatprep.subr.mxu0 0.0
    %903 = vmatpush2.msra.mxu0 0.0
    %904 = vmatprep.subr.mxu0 0.0
    %905 = vmatpush2.msra.mxu0 0.0
    %906 = vmatprep.subr.mxu0 0.0
    %907 = vmatpush2.msra.mxu0 0.0
    %908 = vmatprep.subr.mxu0 0.0
    %909 = vmatpush2.msra.mxu0 0.0
    %910 = vmatprep.mubr.f32.mxu0 0.0
    %911 = vmatmul.mubr.f32.gmra.mxu0 %v844
    %v912 = vpop.f32.mrf.mxu0
    %v913 = vadd.f32 %v840, %v912
    %v914 = vpop.f32.mrf.mxu0
    %915 = vdwg.mxu0
    %916 = vst [vmem:[#allocation10] sm:$0x3] %v913
    // Predicated region
    $region62: #{tpu_custom_call.1} parent=1 // pred_check
      _
    $region63: #{tpu_custom_call.1} parent=1 // pred_check_branch
      %918 = sbr.rel (0) target = $region65
    $region64: #{tpu_custom_call.1} parent=1 // pred_region
      %s920 = ssub.s32 32, 32
      %921 = vsyncadd [#allocation4], %s920
      %s923 = sshll.u32 [#allocation10], 4
      %s924 = int_to_ptr.vmem [resolvable:$true] %s923
      %926 = dma.vmem_to_hbm [thread:$0]  %s924, 32, %s11, [#allocation4]
    $region65: #{tpu_custom_call.1} parent=1 // pred_fallthru
      _
    // Predicated region
    $region66: #{tpu_custom_call.1} parent=1 // pred_check
      _
    $region67: #{tpu_custom_call.1} parent=1 // pred_check_branch
      %928 = sbr.rel (0) target = $region69
    $region68: #{tpu_custom_call.1} parent=1 // pred_region
      %929 = dma.done [#allocation4], 32
    $region69: #{tpu_custom_call.1} parent=1 // pred_fallthru
      _
    %930 = vsyncpa [#allocation3], 1
    %931 = vsyncpa [#allocation6], 1
    %932 = vsyncpa [#allocation9], 1
    %933 = vsyncpa [#allocation4], 1

</llo_original>
